<compile_context>
chip_gen: v5e
topology: v5e:2x2
jax: 0.10.0
libtpu: 0.0.40
codegen_flags: <defaults>
</compile_context>

<pallas_src>
import functools

import jax
import jax.numpy as jnp
from jax.experimental import pallas as pl
from jax.experimental.pallas import tpu as pltpu


# ----------------------------------------------------------------------------
# Kernels
# ----------------------------------------------------------------------------
def _mlp_mnist_kernel(x_ref, w1_ref, b1_ref, w2_ref, b2_ref, o_ref):
    """Fused Linear(K, Hp) -> ReLU -> Linear(Hp, NP) on one batch tile."""
    h = jnp.dot(x_ref[...], w1_ref[...], preferred_element_type=jnp.float32)
    h = jnp.maximum(h + b1_ref[...], 0.0)                      # f32 bias + ReLU
    out = jnp.dot(h.astype(w2_ref.dtype), w2_ref[...],
                  preferred_element_type=jnp.float32)
    o_ref[...] = (out + b2_ref[...]).astype(o_ref.dtype)


def _single_linear_kernel(x_ref, w_ref, b_ref, o_ref, acc_ref):
    """Linear(K, NP) with a K-tiled reduction (mlp_CIFAR10 / mlp_ImageNet)."""
    k = pl.program_id(1)

    @pl.when(k == 0)
    def _():
        acc_ref[...] = jnp.zeros_like(acc_ref)

    acc_ref[...] += jnp.dot(x_ref[...], w_ref[...],
                            preferred_element_type=jnp.float32)

    @pl.when(k == pl.num_programs(1) - 1)
    def _():
        o_ref[...] = (acc_ref[...] + b_ref[...]).astype(o_ref.dtype)


# ----------------------------------------------------------------------------
# Tiling helpers
# ----------------------------------------------------------------------------
def _round_up(x, m):
    return (x + m - 1) // m * m


def _cdiv(a, b):
    return (a + b - 1) // b


def _choose_tb(B):
    """Batch tile: <=256 rows (fills the 256-wide v6e/v7x MXU), >=2 tiles when
    B > 8 (so v7x megacore has work on both cores), rows a multiple of 8 and
    padding waste bounded to <8 rows per tile."""
    if B <= 8:
        return 8
    n_tiles = max(2, _cdiv(B, 256))
    return _round_up(_cdiv(B, n_tiles), 8)


def _choose_tk(Kp, NP):
    """K reduction tile: largest of {512, 256, 128} dividing Kp whose
    double-buffered bf16 weight tile stays far below the v5e 16 MiB scoped
    VMEM default (and v7x's smaller physical VMEM)."""
    for tk in (512, 256, 128):
        if Kp % tk == 0 and 2 * tk * NP * 2 <= 8 * 1024 * 1024:
            return tk
    return 128


def _resident_spec(shape):
    """Whole-array block with a constant index map -> stays VMEM-resident.
    Single-buffered: the block index never changes, so a second pipeline
    buffer would be pure VMEM waste."""
    zeros = tuple(0 for _ in shape)
    return pl.BlockSpec(shape, lambda *_: zeros, pipeline_mode=pl.Buffered(1))


# ----------------------------------------------------------------------------
# Forward wrapper (pallas_call plumbing)
# ----------------------------------------------------------------------------
@functools.partial(jax.jit, static_argnames=("n_y", "network_type"))
def deterministic_decoder_forward(t, params, n_y, network_type):
    """Pallas forward pass of Deterministic_decoder.

    t: [batch, K] float32
    params: dict of padded bf16 weights / f32 biases from init_params
    n_y: logical number of output logits (static)
    """
    B, K = t.shape
    TB = _choose_tb(B)
    Bp = _round_up(B, TB)

    # bf16 activations: halves x-tile DMA bytes; MXU still accumulates in f32.
    t = t.astype(jnp.bfloat16)

    if network_type == "mlp_mnist":
        w1, b1, w2, b2 = params["w1"], params["b1"], params["w2"], params["b2"]
        Hp = w1.shape[1]
        NP = w2.shape[1]
        if Bp != B:
            t = jnp.pad(t, ((0, Bp - B), (0, 0)))
        grid = (Bp // TB,)

        flops = 2 * Bp * K * Hp + 2 * Bp * Hp * NP
        bytes_accessed = (Bp * K * 2 + w1.size * 2 + b1.size * 4
                          + w2.size * 2 + b2.size * 4 + Bp * NP * 4)

        out = pl.pallas_call(
            _mlp_mnist_kernel,
            out_shape=jax.ShapeDtypeStruct((Bp, NP), jnp.float32),
            grid=grid,
            in_specs=[
                pl.BlockSpec((TB, K), lambda i: (i, 0)),
                _resident_spec(w1.shape),
                _resident_spec(b1.shape),
                _resident_spec(w2.shape),
                _resident_spec(b2.shape),
            ],
            out_specs=pl.BlockSpec((TB, NP), lambda i: (i, 0)),
            compiler_params=pltpu.CompilerParams(
                dimension_semantics=("parallel",)),
            cost_estimate=pl.CostEstimate(
                flops=flops, transcendentals=0, bytes_accessed=bytes_accessed),
        )(t, w1, b1, w2, b2)

    else:  # 'mlp_CIFAR10' or 'mlp_ImageNet'
        w, b = params["w"], params["b"]
        Kp, NP = w.shape
        TK = _choose_tk(Kp, NP)
        if Bp != B or Kp != K:
            t = jnp.pad(t, ((0, Bp - B), (0, Kp - K)))
        grid = (Bp // TB, Kp // TK)

        flops = 2 * Bp * Kp * NP
        bytes_accessed = (Bp * Kp * 2 + (Bp // TB) * Kp * NP * 2
                          + b.size * 4 + Bp * NP * 4)

        out = pl.pallas_call(
            _single_linear_kernel,
            out_shape=jax.ShapeDtypeStruct((Bp, NP), jnp.float32),
            grid=grid,
            in_specs=[
                pl.BlockSpec((TB, TK), lambda i, k: (i, k)),
                pl.BlockSpec((TK, NP), lambda i, k: (k, 0)),
                _resident_spec(b.shape),
            ],
            out_specs=pl.BlockSpec((TB, NP), lambda i, k: (i, 0)),
            scratch_shapes=[pltpu.VMEM((TB, NP), jnp.float32)],
            compiler_params=pltpu.CompilerParams(
                dimension_semantics=("parallel", "arbitrary")),
            cost_estimate=pl.CostEstimate(
                flops=flops, transcendentals=0, bytes_accessed=bytes_accessed),
        )(t, w, b)

    # Padded rows/lanes hold garbage: this slice is mandatory.
    return out[:B, :n_y]


# ----------------------------------------------------------------------------
# Parameter init (mimics torch.nn.Linear default U(-1/sqrt(fan_in), +...)),
# with zero-filled padding:
#   * hidden dim 800 -> 896 (7*128, lane aligned),
#   * n_y -> multiple of 128 (lane-dense output slab),
#   * single-linear in-dim K -> multiple of 128 (for the K reduction grid),
#   * bf16 weights (MXU-native), f32 biases.
# ----------------------------------------------------------------------------
_HIDDEN = 800
_HIDDEN_PAD = 896


def init_params(key, K, n_y, network_type):
    n_y_pad = _round_up(n_y, 128)

    def linear(key, fan_in, fan_out, pad_in, pad_out):
        kw, kb = jax.random.split(key)
        bound = 1.0 / jnp.sqrt(jnp.float32(fan_in))
        w = jax.random.uniform(kw, (fan_in, fan_out), jnp.float32, -bound, bound)
        b = jax.random.uniform(kb, (1, fan_out), jnp.float32, -bound, bound)
        w = jnp.pad(w, ((0, pad_in - fan_in), (0, pad_out - fan_out)))
        b = jnp.pad(b, ((0, 0), (0, pad_out - fan_out)))
        return w.astype(jnp.bfloat16), b  # bf16 weights, f32 bias

    if network_type == "mlp_mnist":
        k1, k2 = jax.random.split(key)
        w1, b1 = linear(k1, K, _HIDDEN, K, _HIDDEN_PAD)
        w2, b2 = linear(k2, _HIDDEN, n_y, _HIDDEN_PAD, n_y_pad)
        return {"w1": w1, "b1": b1, "w2": w2, "b2": b2}
    else:
        K_pad = _round_up(K, 128)
        w, b = linear(key, K, n_y, K_pad, n_y_pad)
        return {"w": w, "b": b}


# Pure-JAX reference reproducing the kernel's numerics (bf16 operands,
# f32 accumulation) on the same padded params.
def reference_forward(t, params, n_y, network_type):
    tb = t.astype(jnp.bfloat16).astype(jnp.float32)
    if network_type == "mlp_mnist":
        h = jnp.maximum(tb @ params["w1"].astype(jnp.float32) + params["b1"], 0.0)
        h = h.astype(jnp.bfloat16).astype(jnp.float32)
        out = h @ params["w2"].astype(jnp.float32) + params["b2"]
    else:
        K = t.shape[1]
        out = tb @ params["w"][:K].astype(jnp.float32) + params["b"]
    return out[:, :n_y]


if __name__ == "__main__":
    key = jax.random.PRNGKey(0)
    k_in, k_in2, k_in3, k_p1, k_p2, k_p3 = jax.random.split(key, 6)

    batch, K, n_y = 8, 32, 10
    t = jax.random.normal(k_in, (batch, K), jnp.float32)

    # --- mlp_mnist: Linear(K,800) -> ReLU -> Linear(800,n_y) ---
    params_mnist = init_params(k_p1, K, n_y, "mlp_mnist")
    out_mnist = jax.block_until_ready(
        deterministic_decoder_forward(t, params_mnist, n_y, "mlp_mnist"))
    ref_mnist = reference_forward(t, params_mnist, n_y, "mlp_mnist")
    assert out_mnist.shape == (batch, n_y)
    assert jnp.allclose(out_mnist, ref_mnist, atol=2e-2, rtol=2e-2)

    # --- mlp_CIFAR10: single Linear(K, n_y), small K (single k-step) ---
    params_cifar = init_params(k_p2, K, n_y, "mlp_CIFAR10")
    out_cifar = jax.block_until_ready(
        deterministic_decoder_forward(t, params_cifar, n_y, "mlp_CIFAR10"))
    ref_cifar = reference_forward(t, params_cifar, n_y, "mlp_CIFAR10")
    assert out_cifar.shape == (batch, n_y)
    assert jnp.allclose(out_cifar, ref_cifar, atol=2e-2, rtol=2e-2)

    # --- mlp_ImageNet: larger K & B -> exercises K reduction grid (3 k-steps)
    #     and the multi-batch-tile "parallel" axis (2 batch tiles) ---
    K_big, n_y_big, B_big = 300, 40, 200
    t_big = jax.random.normal(k_in2, (B_big, K_big), jnp.float32)
    params_imnet = init_params(k_p3, K_big, n_y_big, "mlp_ImageNet")
    out_imnet = jax.block_until_ready(
        deterministic_decoder_forward(t_big, params_imnet, n_y_big, "mlp_ImageNet"))
    ref_imnet = reference_forward(t_big, params_imnet, n_y_big, "mlp_ImageNet")
    assert out_imnet.shape == (B_big, n_y_big)
    assert jnp.allclose(out_imnet, ref_imnet, atol=2e-2, rtol=2e-2)

    # --- ragged multi-tile batch on the MNIST net (B=200 -> 2 tiles of 104) ---
    t_mb = jax.random.normal(k_in3, (200, K), jnp.float32)
    out_mb = jax.block_until_ready(
        deterministic_decoder_forward(t_mb, params_mnist, n_y, "mlp_mnist"))
    ref_mb = reference_forward(t_mb, params_mnist, n_y, "mlp_mnist")
    assert out_mb.shape == (200, n_y)
    assert jnp.allclose(out_mb, ref_mb, atol=2e-2, rtol=2e-2)

    print("KERNEL_OK")
</pallas_src>

<mosaic_0001>
module attributes {stable_mosaic.version = 11 : i64} {
  func.func @_mlp_mnist_kernel(%arg0: i32, %arg1: memref<8x32xbf16, #tpu.memory_space<vmem>>, %arg2: memref<32x896xbf16, #tpu.memory_space<vmem>>, %arg3: memref<1x896xf32, #tpu.memory_space<vmem>>, %arg4: memref<896x128xbf16, #tpu.memory_space<vmem>>, %arg5: memref<1x128xf32, #tpu.memory_space<vmem>>, %arg6: memref<8x128xf32, #tpu.memory_space<vmem>>) attributes {dimension_semantics = [#tpu.dimension_semantics<parallel>], iteration_bounds = array<i64: 1>, scalar_prefetch = 0 : i64, scratch_operands = 0 : i64, tpu.core_type = #tpu.core_type<tc>, window_params = [{transform_indices = @transform_0, window_bounds = array<i64: 8, 32>}, {pipeline_mode = #tpu.pipeline_mode<synchronous>, transform_indices = @transform_1, window_bounds = array<i64: 32, 896>}, {pipeline_mode = #tpu.pipeline_mode<synchronous>, transform_indices = @transform_2, window_bounds = array<i64: 1, 896>}, {pipeline_mode = #tpu.pipeline_mode<synchronous>, transform_indices = @transform_3, window_bounds = array<i64: 896, 128>}, {pipeline_mode = #tpu.pipeline_mode<synchronous>, transform_indices = @transform_4, window_bounds = array<i64: 1, 128>}, {transform_indices = @transform_5, window_bounds = array<i64: 8, 128>}]} {
    %c0 = arith.constant 0 : index
    %c0_0 = arith.constant 0 : index
    %0 = vector.load %arg1[%c0, %c0_0] : memref<8x32xbf16, #tpu.memory_space<vmem>>, vector<8x32xbf16>
    %c0_1 = arith.constant 0 : index
    %c0_2 = arith.constant 0 : index
    %1 = vector.load %arg2[%c0_1, %c0_2] : memref<32x896xbf16, #tpu.memory_space<vmem>>, vector<32x896xbf16>
    %cst = arith.constant dense<0.000000e+00> : vector<8x896xf32>
    %2 = tpu.matmul %0, %1, %cst {dimension_numbers = #tpu.dot_dimension_numbers<[1], [0], [0], [1], [0, 0, 1, 1], [], []>} : vector<8x32xbf16>, vector<32x896xbf16>, vector<8x896xf32> -> vector<8x896xf32>
    %c0_3 = arith.constant 0 : index
    %c0_4 = arith.constant 0 : index
    %3 = vector.load %arg3[%c0_3, %c0_4] : memref<1x896xf32, #tpu.memory_space<vmem>>, vector<1x896xf32>
    %4 = vector.broadcast %3 : vector<1x896xf32> to vector<8x896xf32>
    %5 = arith.addf %2, %4 : vector<8x896xf32>
    %cst_5 = arith.constant 0.000000e+00 : f32
    %6 = vector.broadcast %cst_5 : f32 to vector<8x896xf32>
    %7 = arith.maximumf %5, %6 : vector<8x896xf32>
    %8 = arith.truncf %7 : vector<8x896xf32> to vector<8x896xbf16>
    %c0_6 = arith.constant 0 : index
    %c0_7 = arith.constant 0 : index
    %9 = vector.load %arg4[%c0_6, %c0_7] : memref<896x128xbf16, #tpu.memory_space<vmem>>, vector<896x128xbf16>
    %cst_8 = arith.constant dense<0.000000e+00> : vector<8x128xf32>
    %10 = tpu.matmul %8, %9, %cst_8 {dimension_numbers = #tpu.dot_dimension_numbers<[1], [0], [0], [1], [0, 0, 1, 1], [], []>} : vector<8x896xbf16>, vector<896x128xbf16>, vector<8x128xf32> -> vector<8x128xf32>
    %c0_9 = arith.constant 0 : index
    %c0_10 = arith.constant 0 : index
    %11 = vector.load %arg5[%c0_9, %c0_10] : memref<1x128xf32, #tpu.memory_space<vmem>>, vector<1x128xf32>
    %12 = vector.broadcast %11 : vector<1x128xf32> to vector<8x128xf32>
    %13 = arith.addf %10, %12 : vector<8x128xf32>
    %c0_11 = arith.constant 0 : index
    %c0_12 = arith.constant 0 : index
    %14 = vector.load %arg6[%c0_11, %c0_12] : memref<8x128xf32, #tpu.memory_space<vmem>>, vector<8x128xf32>
    tpu.vector_store %arg6[%c0_11, %c0_12], %13 {strides = array<i32>} : memref<8x128xf32, #tpu.memory_space<vmem>>, vector<8x128xf32>,
    return
  }
  func.func @transform_0(%arg0: i32) -> (i32, i32) {
    %c0_i32 = arith.constant 0 : i32
    %c0_i32_0 = arith.constant 0 : i32
    return %arg0, %c0_i32 : i32, i32
  }
  func.func @transform_1(%arg0: i32) -> (i32, i32) {
    %c0_i32 = arith.constant 0 : i32
    %c0_i32_0 = arith.constant 0 : i32
    %c0_i32_1 = arith.constant 0 : i32
    return %c0_i32, %c0_i32_0 : i32, i32
  }
  func.func @transform_2(%arg0: i32) -> (i32, i32) {
    %c0_i32 = arith.constant 0 : i32
    %c0_i32_0 = arith.constant 0 : i32
    %c0_i32_1 = arith.constant 0 : i32
    return %c0_i32, %c0_i32_0 : i32, i32
  }
  func.func @transform_3(%arg0: i32) -> (i32, i32) {
    %c0_i32 = arith.constant 0 : i32
    %c0_i32_0 = arith.constant 0 : i32
    %c0_i32_1 = arith.constant 0 : i32
    return %c0_i32, %c0_i32_0 : i32, i32
  }
  func.func @transform_4(%arg0: i32) -> (i32, i32) {
    %c0_i32 = arith.constant 0 : i32
    %c0_i32_0 = arith.constant 0 : i32
    %c0_i32_1 = arith.constant 0 : i32
    return %c0_i32, %c0_i32_0 : i32, i32
  }
  func.func @transform_5(%arg0: i32) -> (i32, i32) {
    %c0_i32 = arith.constant 0 : i32
    %c0_i32_0 = arith.constant 0 : i32
    return %arg0, %c0_i32 : i32, i32
  }
}

</mosaic_0001>

<llo_original>
// kernel: deterministic_decoder_forward.1
$region0: #{deterministic_decoder_forward.1}
  #allocation0 [shape = 'u32[]', space=smem, size = 0x4, offset = 0x4, fixed_abs, tag = 'smem constant byte address 0x4 - core index']
  #allocation1 [shape = 'u32[72,128]{1,0:T(1,128)}', space=vmem, size = 0x9000, scoped, tag = 'internal scratch']
  %s0 = inlined_call_operand.vmem [shape: bf16[8,32], index: 0, kind: input, shape index: {}]
  %s1 = inlined_call_operand.hbm [shape: bf16[32,896], index: 1, kind: input, shape index: {}]
  %s2 = inlined_call_operand.vmem [shape: f32[1,896], index: 2, kind: input, shape index: {}]
  %s3 = inlined_call_operand.hbm [shape: bf16[896,128], index: 3, kind: input, shape index: {}]
  %s4 = inlined_call_operand.vmem [shape: f32[1,128], index: 4, kind: input, shape index: {}]
  %s5 = inlined_call_operand.hbm [shape: f32[8,128], index: 5, kind: output, shape index: {}]
  %s6 = sld [smem:[#allocation0]]
  $region38: #{deterministic_decoder_forward.1} parent=0
    _
  %s8 = ssub.s32 1, %s6
  %s9 = scalar_select 0, %s8, %s6
  $region1: #{deterministic_decoder_forward.1} parent=0
    #allocation2 [shape = 'u8[57344]{0}', space=vmem, size = 0xe000, scoped, tag = 'input window, operand 1, single buffered']
    #allocation3 [shape = 's32[1]{0}', space=sflag, size = 0x4, scoped, tag = 'scoped memory for deterministic_decoder_forward.1']
    #allocation4 [shape = 's32[1]{0}', space=sflag, size = 0x4, scoped, tag = 'scoped memory for deterministic_decoder_forward.1']
    #allocation5 [shape = 'u8[229376]{0}', space=vmem, size = 0x38000, scoped, tag = 'input window, operand 3, single buffered']
    #allocation6 [shape = 's32[1]{0}', space=sflag, size = 0x4, scoped, tag = 'scoped memory for deterministic_decoder_forward.1']
    #allocation7 [shape = 'u8[4096]{0}', space=vmem, size = 0x1000, scoped, tag = 'output window, operand 0, single buffered']
    %10 = vsyncpa [#allocation3], 0
    %11 = vsyncpa [#allocation6], 0
    %12 = vsyncpa [#allocation4], 0
    // Predicated region
    $region2: #{deterministic_decoder_forward.1} parent=1 // pred_check
      _
    $region3: #{deterministic_decoder_forward.1} parent=1 // pred_check_branch
      %14 = sbr.rel (0) target = $region5
    $region4: #{deterministic_decoder_forward.1} parent=1 // pred_region
      _
    $region5: #{deterministic_decoder_forward.1} parent=1 // pred_fallthru
      _
    // Predicated region
    $region6: #{deterministic_decoder_forward.1} parent=1 // pred_check
      _
    $region7: #{deterministic_decoder_forward.1} parent=1 // pred_check_branch
      %16 = sbr.rel (0) target = $region9
    $region8: #{deterministic_decoder_forward.1} parent=1 // pred_region
      %18 = vsyncadd [#allocation3], 0
      %s19 = sshll.u32 %s1, 4
      %s20 = int_to_ptr.hbm [resolvable:$true] %s19
      %s21 = sshll.u32 [#allocation2], 4
      %s22 = int_to_ptr.vmem [resolvable:$true] %s21
      %27 = dma.hbm_to_vmem [thread:$0]  %s20, 1792, %s22, [#allocation3], 448, 448, 28
    $region9: #{deterministic_decoder_forward.1} parent=1 // pred_fallthru
      _
    // Predicated region
    $region10: #{deterministic_decoder_forward.1} parent=1 // pred_check
      _
    $region11: #{deterministic_decoder_forward.1} parent=1 // pred_check_branch
      %29 = sbr.rel (0) target = $region13
    $region12: #{deterministic_decoder_forward.1} parent=1 // pred_region
      _
    $region13: #{deterministic_decoder_forward.1} parent=1 // pred_fallthru
      _
    // Predicated region
    $region14: #{deterministic_decoder_forward.1} parent=1 // pred_check
      _
    $region15: #{deterministic_decoder_forward.1} parent=1 // pred_check_branch
      %31 = sbr.rel (0) target = $region17
    $region16: #{deterministic_decoder_forward.1} parent=1 // pred_region
      %33 = vsyncadd [#allocation6], 0
      %s34 = sshll.u32 %s3, 4
      %s35 = int_to_ptr.hbm [resolvable:$true] %s34
      %s36 = sshll.u32 [#allocation5], 4
      %s37 = int_to_ptr.vmem [resolvable:$true] %s36
      %42 = dma.hbm_to_vmem [thread:$0]  %s35, 7168, %s37, [#allocation6], 64, 64, 4
    $region17: #{deterministic_decoder_forward.1} parent=1 // pred_fallthru
      _
    // Predicated region
    $region18: #{deterministic_decoder_forward.1} parent=1 // pred_check
      _
    $region19: #{deterministic_decoder_forward.1} parent=1 // pred_check_branch
      %44 = sbr.rel (0) target = $region21
    $region20: #{deterministic_decoder_forward.1} parent=1 // pred_region
      _
    $region21: #{deterministic_decoder_forward.1} parent=1 // pred_fallthru
      _
    // Predicated region
    $region22: #{deterministic_decoder_forward.1} parent=1 // pred_check
      _
    $region23: #{deterministic_decoder_forward.1} parent=1 // pred_check_branch
      %46 = sbr.rel (0) target = $region25
    $region24: #{deterministic_decoder_forward.1} parent=1 // pred_region
      %48 = dma.done [#allocation3], 1792
    $region25: #{deterministic_decoder_forward.1} parent=1 // pred_fallthru
      _
    // Predicated region
    $region26: #{deterministic_decoder_forward.1} parent=1 // pred_check
      _
    $region27: #{deterministic_decoder_forward.1} parent=1 // pred_check_branch
      %50 = sbr.rel (0) target = $region29
    $region28: #{deterministic_decoder_forward.1} parent=1 // pred_region
      %52 = dma.done [#allocation6], 7168
    $region29: #{deterministic_decoder_forward.1} parent=1 // pred_fallthru
      _
    %v54 = vld [vmem:[%s0] sm:$0xf]
    %v55 = vld [vmem:[#allocation2] sm:$0xff]
    %v56 = vld [vmem:[#allocation2 + $0x8] sm:$0xff]
    %v57 = vld [vmem:[#allocation2 + $0x10] sm:$0xff]
    %v58 = vld [vmem:[#allocation2 + $0x18] sm:$0xf]
    %v59 = vld [vmem:[#allocation2 + $0x1c] sm:$0xff]
    %v60 = vld [vmem:[#allocation2 + $0x24] sm:$0xff]
    %v61 = vld [vmem:[#allocation2 + $0x2c] sm:$0xff]
    %v62 = vld [vmem:[#allocation2 + $0x34] sm:$0xf]
    %v63 = vld [vmem:[#allocation2 + $0x38] sm:$0xff]
    %v64 = vld [vmem:[#allocation2 + $0x40] sm:$0xff]
    %v65 = vld [vmem:[#allocation2 + $0x48] sm:$0xff]
    %v66 = vld [vmem:[#allocation2 + $0x50] sm:$0xf]
    %v67 = vld [vmem:[#allocation2 + $0x54] sm:$0xff]
    %v68 = vld [vmem:[#allocation2 + $0x5c] sm:$0xff]
    %v69 = vld [vmem:[#allocation2 + $0x64] sm:$0xff]
    %v70 = vld [vmem:[#allocation2 + $0x6c] sm:$0xf]
    %v71 = vld [vmem:[%s2] sm:$0xff]
    %v73 = vperm.slane %v71, 0
    %v74 = vperm.slane %v71, 1
    %v75 = vperm.slane %v71, 2
    %v76 = vperm.slane %v71, 3
    %v77 = vperm.slane %v71, 4
    %v78 = vperm.slane %v71, 5
    %v79 = vperm.slane %v71, 6
    %v103 = vunpack.c.l.b16 %v55
    %v104 = vunpack.c.h.b16 %v55
    %v105 = vunpack.c.l.b16 %v56
    %v106 = vunpack.c.h.b16 %v56
    %v107 = vunpack.c.l.b16 %v57
    %v108 = vunpack.c.h.b16 %v57
    %v109 = vunpack.c.l.b16 %v58
    %v110 = vunpack.c.l.b16 %v59
    %v111 = vunpack.c.h.b16 %v59
    %v112 = vunpack.c.l.b16 %v60
    %v113 = vunpack.c.h.b16 %v60
    %v114 = vunpack.c.l.b16 %v61
    %v115 = vunpack.c.h.b16 %v61
    %v116 = vunpack.c.l.b16 %v62
    %v117 = vunpack.c.l.b16 %v63
    %v118 = vunpack.c.h.b16 %v63
    %v119 = vunpack.c.l.b16 %v64
    %v120 = vunpack.c.h.b16 %v64
    %v121 = vunpack.c.l.b16 %v65
    %v122 = vunpack.c.h.b16 %v65
    %v123 = vunpack.c.l.b16 %v66
    %v124 = vunpack.c.l.b16 %v67
    %v125 = vunpack.c.h.b16 %v67
    %v126 = vunpack.c.l.b16 %v68
    %v127 = vunpack.c.h.b16 %v68
    %v128 = vunpack.c.l.b16 %v69
    %v129 = vunpack.c.h.b16 %v69
    %v130 = vunpack.c.l.b16 %v70
    %v131 = vpack.c.b16 %v110, %v103
    %v132 = vpack.c.b16 %v111, %v104
    %v133 = vpack.c.b16 %v112, %v105
    %v134 = vpack.c.b16 %v113, %v106
    %v135 = vpack.c.b16 %v114, %v107
    %v136 = vpack.c.b16 %v115, %v108
    %v137 = vpack.c.b16 %v116, %v109
    %v138 = vpack.c.b16 %v124, %v117
    %v139 = vpack.c.b16 %v125, %v118
    %v140 = vpack.c.b16 %v126, %v119
    %v141 = vpack.c.b16 %v127, %v120
    %v142 = vpack.c.b16 %v128, %v121
    %v143 = vpack.c.b16 %v129, %v122
    %v144 = vpack.c.b16 %v130, %v123
    %vm159 = vcmask 261120
    %v161 = vsel %vm159, %v54, 0
    %163 = vmatpush.bf16.msra.mxu0 0
    %164 = vmatpush.bf16.msra.mxu0 0
    %165 = vmatpush.bf16.msra.mxu0 0
    %166 = vmatpush.bf16.msra.mxu0 0
    %167 = vmatpush.bf16.msra.mxu0 0
    %168 = vmatpush.bf16.msra.mxu0 0
    %169 = vmatpush.bf16.msra.mxu0 %v138
    %170 = vmatpush.bf16.msra.mxu0 %v131
    %171 = vmatmul.bf16.gmra.mxu0 %v161
    %v172 = vpop.f32.mrf.mxu0
    %v173 = vadd.f32 %v73, %v172
    %v174 = vpop.f32.mrf.mxu0
    %175 = vdwg.mxu0
    %176 = vmatpush.bf16.msra.mxu0 0
    %177 = vmatpush.bf16.msra.mxu0 0
    %178 = vmatpush.bf16.msra.mxu0 0
    %179 = vmatpush.bf16.msra.mxu0 0
    %180 = vmatpush.bf16.msra.mxu0 0
    %181 = vmatpush.bf16.msra.mxu0 0
    %182 = vmatpush.bf16.msra.mxu0 %v139
    %183 = vmatpush.bf16.msra.mxu0 %v132
    %184 = vmatmul.bf16.gmra.mxu0 %v161
    %v185 = vpop.f32.mrf.mxu0
    %v186 = vadd.f32 %v74, %v185
    %v187 = vpop.f32.mrf.mxu0
    %188 = vdwg.mxu0
    %189 = vmatpush.bf16.msra.mxu0 0
    %190 = vmatpush.bf16.msra.mxu0 0
    %191 = vmatpush.bf16.msra.mxu0 0
    %192 = vmatpush.bf16.msra.mxu0 0
    %193 = vmatpush.bf16.msra.mxu0 0
    %194 = vmatpush.bf16.msra.mxu0 0
    %195 = vmatpush.bf16.msra.mxu0 %v140
    %196 = vmatpush.bf16.msra.mxu0 %v133
    %197 = vmatmul.bf16.gmra.mxu0 %v161
    %v198 = vpop.f32.mrf.mxu0
    %v199 = vadd.f32 %v75, %v198
    %v200 = vpop.f32.mrf.mxu0
    %201 = vdwg.mxu0
    %202 = vmatpush.bf16.msra.mxu0 0
    %203 = vmatpush.bf16.msra.mxu0 0
    %204 = vmatpush.bf16.msra.mxu0 0
    %205 = vmatpush.bf16.msra.mxu0 0
    %206 = vmatpush.bf16.msra.mxu0 0
    %207 = vmatpush.bf16.msra.mxu0 0
    %208 = vmatpush.bf16.msra.mxu0 %v141
    %209 = vmatpush.bf16.msra.mxu0 %v134
    %210 = vmatmul.bf16.gmra.mxu0 %v161
    %v211 = vpop.f32.mrf.mxu0
    %v212 = vadd.f32 %v76, %v211
    %v213 = vpop.f32.mrf.mxu0
    %214 = vdwg.mxu0
    %215 = vmatpush.bf16.msra.mxu0 0
    %216 = vmatpush.bf16.msra.mxu0 0
    %217 = vmatpush.bf16.msra.mxu0 0
    %218 = vmatpush.bf16.msra.mxu0 0
    %219 = vmatpush.bf16.msra.mxu0 0
    %220 = vmatpush.bf16.msra.mxu0 0
    %221 = vmatpush.bf16.msra.mxu0 %v142
    %222 = vmatpush.bf16.msra.mxu0 %v135
    %223 = vmatmul.bf16.gmra.mxu0 %v161
    %v224 = vpop.f32.mrf.mxu0
    %v225 = vadd.f32 %v77, %v224
    %v226 = vpop.f32.mrf.mxu0
    %227 = vdwg.mxu0
    %228 = vmatpush.bf16.msra.mxu0 0
    %229 = vmatpush.bf16.msra.mxu0 0
    %230 = vmatpush.bf16.msra.mxu0 0
    %231 = vmatpush.bf16.msra.mxu0 0
    %232 = vmatpush.bf16.msra.mxu0 0
    %233 = vmatpush.bf16.msra.mxu0 0
    %234 = vmatpush.bf16.msra.mxu0 %v143
    %235 = vmatpush.bf16.msra.mxu0 %v136
    %236 = vmatmul.bf16.gmra.mxu0 %v161
    %v237 = vpop.f32.mrf.mxu0
    %v238 = vadd.f32 %v78, %v237
    %v239 = vpop.f32.mrf.mxu0
    %240 = vdwg.mxu0
    %241 = vmatpush.bf16.msra.mxu0 0
    %242 = vmatpush.bf16.msra.mxu0 0
    %243 = vmatpush.bf16.msra.mxu0 0
    %244 = vmatpush.bf16.msra.mxu0 0
    %245 = vmatpush.bf16.msra.mxu0 0
    %246 = vmatpush.bf16.msra.mxu0 0
    %247 = vmatpush.bf16.msra.mxu0 %v144
    %248 = vmatpush.bf16.msra.mxu0 %v137
    %249 = vmatmul.bf16.gmra.mxu0 %v161
    %v250 = vpop.f32.mrf.mxu0
    %v251 = vadd.f32 %v79, %v250
    %v252 = vpop.f32.mrf.mxu0
    %253 = vdwg.mxu0
    %v254 = vmax.f32 %v173, 0.0
    %v255 = vmax.f32 %v186, 0.0
    %v256 = vmax.f32 %v199, 0.0
    %v257 = vmax.f32 %v212, 0.0
    %v258 = vmax.f32 %v225, 0.0
    %v259 = vmax.f32 %v238, 0.0
    %v260 = vmax.f32 %v251, 0.0
    %v261 = vpack.c.bf16 %v254, %v254
    %v262 = vpack.c.bf16 %v255, %v255
    %v263 = vpack.c.bf16 %v256, %v256
    %v264 = vpack.c.bf16 %v257, %v257
    %v265 = vpack.c.bf16 %v258, %v258
    %v266 = vpack.c.bf16 %v259, %v259
    %v267 = vpack.c.bf16 %v260, %v260
    %v268 = vld [vmem:[#allocation5] sm:$0xf]
    %v269 = vld [vmem:[#allocation5 + $0x4] sm:$0xf]
    %v270 = vld [vmem:[#allocation5 + $0x8] sm:$0xf]
    %v271 = vld [vmem:[#allocation5 + $0xc] sm:$0xf]
    %v272 = vld [vmem:[#allocation5 + $0x10] sm:$0xf]
    %v273 = vld [vmem:[#allocation5 + $0x14] sm:$0xf]
    %v274 = vld [vmem:[#allocation5 + $0x18] sm:$0xf]
    %v275 = vld [vmem:[#allocation5 + $0x1c] sm:$0xf]
    %v276 = vld [vmem:[#allocation5 + $0x20] sm:$0xf]
    %v277 = vld [vmem:[#allocation5 + $0x24] sm:$0xf]
    %v278 = vld [vmem:[#allocation5 + $0x28] sm:$0xf]
    %v279 = vld [vmem:[#allocation5 + $0x2c] sm:$0xf]
    %v280 = vld [vmem:[#allocation5 + $0x30] sm:$0xf]
    %v281 = vld [vmem:[#allocation5 + $0x34] sm:$0xf]
    %v282 = vld [vmem:[#allocation5 + $0x38] sm:$0xf]
    %v283 = vld [vmem:[#allocation5 + $0x3c] sm:$0xf]
    %v284 = vld [vmem:[#allocation5 + $0x40] sm:$0xf]
    %v285 = vld [vmem:[#allocation5 + $0x44] sm:$0xf]
    %v286 = vld [vmem:[#allocation5 + $0x48] sm:$0xf]
    %v287 = vld [vmem:[#allocation5 + $0x4c] sm:$0xf]
    %v288 = vld [vmem:[#allocation5 + $0x50] sm:$0xf]
    %v289 = vld [vmem:[#allocation5 + $0x54] sm:$0xf]
    %v290 = vld [vmem:[#allocation5 + $0x58] sm:$0xf]
    %v291 = vld [vmem:[#allocation5 + $0x5c] sm:$0xf]
    %v292 = vld [vmem:[#allocation5 + $0x60] sm:$0xf]
    %v293 = vld [vmem:[#allocation5 + $0x64] sm:$0xf]
    %v294 = vld [vmem:[#allocation5 + $0x68] sm:$0xf]
    %v295 = vld [vmem:[#allocation5 + $0x6c] sm:$0xf]
    %v296 = vld [vmem:[#allocation5 + $0x70] sm:$0xf]
    %v297 = vld [vmem:[#allocation5 + $0x74] sm:$0xf]
    %v298 = vld [vmem:[#allocation5 + $0x78] sm:$0xf]
    %v299 = vld [vmem:[#allocation5 + $0x7c] sm:$0xf]
    %v300 = vld [vmem:[#allocation5 + $0x80] sm:$0xf]
    %v301 = vld [vmem:[#allocation5 + $0x84] sm:$0xf]
    %v302 = vld [vmem:[#allocation5 + $0x88] sm:$0xf]
    %v303 = vld [vmem:[#allocation5 + $0x8c] sm:$0xf]
    %v304 = vld [vmem:[#allocation5 + $0x90] sm:$0xf]
    %v305 = vld [vmem:[#allocation5 + $0x94] sm:$0xf]
    %v306 = vld [vmem:[#allocation5 + $0x98] sm:$0xf]
    %v307 = vld [vmem:[#allocation5 + $0x9c] sm:$0xf]
    %v308 = vld [vmem:[#allocation5 + $0xa0] sm:$0xf]
    %v309 = vld [vmem:[#allocation5 + $0xa4] sm:$0xf]
    %v310 = vld [vmem:[#allocation5 + $0xa8] sm:$0xf]
    %v311 = vld [vmem:[#allocation5 + $0xac] sm:$0xf]
    %v312 = vld [vmem:[#allocation5 + $0xb0] sm:$0xf]
    %v313 = vld [vmem:[#allocation5 + $0xb4] sm:$0xf]
    %v314 = vld [vmem:[#allocation5 + $0xb8] sm:$0xf]
    %v315 = vld [vmem:[#allocation5 + $0xbc] sm:$0xf]
    %v316 = vld [vmem:[#allocation5 + $0xc0] sm:$0xf]
    %v317 = vld [vmem:[#allocation5 + $0xc4] sm:$0xf]
    %v318 = vld [vmem:[#allocation5 + $0xc8] sm:$0xf]
    %v319 = vld [vmem:[#allocation5 + $0xcc] sm:$0xf]
    %v320 = vld [vmem:[#allocation5 + $0xd0] sm:$0xf]
    %v321 = vld [vmem:[#allocation5 + $0xd4] sm:$0xf]
    %v322 = vld [vmem:[#allocation5 + $0xd8] sm:$0xf]
    %v323 = vld [vmem:[#allocation5 + $0xdc] sm:$0xf]
    %v324 = vld [vmem:[#allocation5 + $0xe0] sm:$0xf]
    %v325 = vld [vmem:[#allocation5 + $0xe4] sm:$0xf]
    %v326 = vld [vmem:[#allocation5 + $0xe8] sm:$0xf]
    %v327 = vld [vmem:[#allocation5 + $0xec] sm:$0xf]
    %v328 = vld [vmem:[#allocation5 + $0xf0] sm:$0xf]
    %v329 = vld [vmem:[#allocation5 + $0xf4] sm:$0xf]
    %v330 = vld [vmem:[#allocation5 + $0xf8] sm:$0xf]
    %v331 = vld [vmem:[#allocation5 + $0xfc] sm:$0xf]
    %v332 = vld [vmem:[#allocation5 + $0x100] sm:$0xf]
    %v333 = vld [vmem:[#allocation5 + $0x104] sm:$0xf]
    %v334 = vld [vmem:[#allocation5 + $0x108] sm:$0xf]
    %v335 = vld [vmem:[#allocation5 + $0x10c] sm:$0xf]
    %v336 = vld [vmem:[#allocation5 + $0x110] sm:$0xf]
    %v337 = vld [vmem:[#allocation5 + $0x114] sm:$0xf]
    %v338 = vld [vmem:[#allocation5 + $0x118] sm:$0xf]
    %v339 = vld [vmem:[#allocation5 + $0x11c] sm:$0xf]
    %v340 = vld [vmem:[#allocation5 + $0x120] sm:$0xf]
    %v341 = vld [vmem:[#allocation5 + $0x124] sm:$0xf]
    %v342 = vld [vmem:[#allocation5 + $0x128] sm:$0xf]
    %v343 = vld [vmem:[#allocation5 + $0x12c] sm:$0xf]
    %v344 = vld [vmem:[#allocation5 + $0x130] sm:$0xf]
    %v345 = vld [vmem:[#allocation5 + $0x134] sm:$0xf]
    %v346 = vld [vmem:[#allocation5 + $0x138] sm:$0xf]
    %v347 = vld [vmem:[#allocation5 + $0x13c] sm:$0xf]
    %v348 = vld [vmem:[#allocation5 + $0x140] sm:$0xf]
    %v349 = vld [vmem:[#allocation5 + $0x144] sm:$0xf]
    %v350 = vld [vmem:[#allocation5 + $0x148] sm:$0xf]
    %v351 = vld [vmem:[#allocation5 + $0x14c] sm:$0xf]
    %v352 = vld [vmem:[#allocation5 + $0x150] sm:$0xf]
    %v353 = vld [vmem:[#allocation5 + $0x154] sm:$0xf]
    %v354 = vld [vmem:[#allocation5 + $0x158] sm:$0xf]
    %v355 = vld [vmem:[#allocation5 + $0x15c] sm:$0xf]
    %v356 = vld [vmem:[#allocation5 + $0x160] sm:$0xf]
    %v357 = vld [vmem:[#allocation5 + $0x164] sm:$0xf]
    %v358 = vld [vmem:[#allocation5 + $0x168] sm:$0xf]
    %v359 = vld [vmem:[#allocation5 + $0x16c] sm:$0xf]
    %v360 = vld [vmem:[#allocation5 + $0x170] sm:$0xf]
    %v361 = vld [vmem:[#allocation5 + $0x174] sm:$0xf]
    %v362 = vld [vmem:[#allocation5 + $0x178] sm:$0xf]
    %v363 = vld [vmem:[#allocation5 + $0x17c] sm:$0xf]
    %v364 = vld [vmem:[#allocation5 + $0x180] sm:$0xf]
    %v365 = vld [vmem:[#allocation5 + $0x184] sm:$0xf]
    %v366 = vld [vmem:[#allocation5 + $0x188] sm:$0xf]
    %v367 = vld [vmem:[#allocation5 + $0x18c] sm:$0xf]
    %v368 = vld [vmem:[#allocation5 + $0x190] sm:$0xf]
    %v369 = vld [vmem:[#allocation5 + $0x194] sm:$0xf]
    %v370 = vld [vmem:[#allocation5 + $0x198] sm:$0xf]
    %v371 = vld [vmem:[#allocation5 + $0x19c] sm:$0xf]
    %v372 = vld [vmem:[#allocation5 + $0x1a0] sm:$0xf]
    %v373 = vld [vmem:[#allocation5 + $0x1a4] sm:$0xf]
    %v374 = vld [vmem:[#allocation5 + $0x1a8] sm:$0xf]
    %v375 = vld [vmem:[#allocation5 + $0x1ac] sm:$0xf]
    %v376 = vld [vmem:[#allocation5 + $0x1b0] sm:$0xf]
    %v377 = vld [vmem:[#allocation5 + $0x1b4] sm:$0xf]
    %v378 = vld [vmem:[#allocation5 + $0x1b8] sm:$0xf]
    %v379 = vld [vmem:[#allocation5 + $0x1bc] sm:$0xf]
    %v380 = vld [vmem:[%s4] sm:$0x1]
    %v382 = vperm.slane %v380, 0
    %v496 = vunpack.c.l.b16 %v268
    %v497 = vunpack.c.l.b16 %v269
    %v498 = vunpack.c.l.b16 %v270
    %v499 = vunpack.c.l.b16 %v271
    %v500 = vunpack.c.l.b16 %v272
    %v501 = vunpack.c.l.b16 %v273
    %v502 = vunpack.c.l.b16 %v274
    %v503 = vunpack.c.l.b16 %v275
    %v504 = vunpack.c.l.b16 %v276
    %v505 = vunpack.c.l.b16 %v277
    %v506 = vunpack.c.l.b16 %v278
    %v507 = vunpack.c.l.b16 %v279
    %v508 = vunpack.c.l.b16 %v280
    %v509 = vunpack.c.l.b16 %v281
    %v510 = vunpack.c.l.b16 %v282
    %v511 = vunpack.c.l.b16 %v283
    %v512 = vunpack.c.l.b16 %v284
    %v513 = vunpack.c.l.b16 %v285
    %v514 = vunpack.c.l.b16 %v286
    %v515 = vunpack.c.l.b16 %v287
    %v516 = vunpack.c.l.b16 %v288
    %v517 = vunpack.c.l.b16 %v289
    %v518 = vunpack.c.l.b16 %v290
    %v519 = vunpack.c.l.b16 %v291
    %v520 = vunpack.c.l.b16 %v292
    %v521 = vunpack.c.l.b16 %v293
    %v522 = vunpack.c.l.b16 %v294
    %v523 = vunpack.c.l.b16 %v295
    %v524 = vunpack.c.l.b16 %v296
    %v525 = vunpack.c.l.b16 %v297
    %v526 = vunpack.c.l.b16 %v298
    %v527 = vunpack.c.l.b16 %v299
    %v528 = vunpack.c.l.b16 %v300
    %v529 = vunpack.c.l.b16 %v301
    %v530 = vunpack.c.l.b16 %v302
    %v531 = vunpack.c.l.b16 %v303
    %v532 = vunpack.c.l.b16 %v304
    %v533 = vunpack.c.l.b16 %v305
    %v534 = vunpack.c.l.b16 %v306
    %v535 = vunpack.c.l.b16 %v307
    %v536 = vunpack.c.l.b16 %v308
    %v537 = vunpack.c.l.b16 %v309
    %v538 = vunpack.c.l.b16 %v310
    %v539 = vunpack.c.l.b16 %v311
    %v540 = vunpack.c.l.b16 %v312
    %v541 = vunpack.c.l.b16 %v313
    %v542 = vunpack.c.l.b16 %v314
    %v543 = vunpack.c.l.b16 %v315
    %v544 = vunpack.c.l.b16 %v316
    %v545 = vunpack.c.l.b16 %v317
    %v546 = vunpack.c.l.b16 %v318
    %v547 = vunpack.c.l.b16 %v319
    %v548 = vunpack.c.l.b16 %v320
    %v549 = vunpack.c.l.b16 %v321
    %v550 = vunpack.c.l.b16 %v322
    %v551 = vunpack.c.l.b16 %v323
    %v552 = vunpack.c.l.b16 %v324
    %v553 = vunpack.c.l.b16 %v325
    %v554 = vunpack.c.l.b16 %v326
    %v555 = vunpack.c.l.b16 %v327
    %v556 = vunpack.c.l.b16 %v328
    %v557 = vunpack.c.l.b16 %v329
    %v558 = vunpack.c.l.b16 %v330
    %v559 = vunpack.c.l.b16 %v331
    %v560 = vunpack.c.l.b16 %v332
    %v561 = vunpack.c.l.b16 %v333
    %v562 = vunpack.c.l.b16 %v334
    %v563 = vunpack.c.l.b16 %v335
    %v564 = vunpack.c.l.b16 %v336
    %v565 = vunpack.c.l.b16 %v337
    %v566 = vunpack.c.l.b16 %v338
    %v567 = vunpack.c.l.b16 %v339
    %v568 = vunpack.c.l.b16 %v340
    %v569 = vunpack.c.l.b16 %v341
    %v570 = vunpack.c.l.b16 %v342
    %v571 = vunpack.c.l.b16 %v343
    %v572 = vunpack.c.l.b16 %v344
    %v573 = vunpack.c.l.b16 %v345
    %v574 = vunpack.c.l.b16 %v346
    %v575 = vunpack.c.l.b16 %v347
    %v576 = vunpack.c.l.b16 %v348
    %v577 = vunpack.c.l.b16 %v349
    %v578 = vunpack.c.l.b16 %v350
    %v579 = vunpack.c.l.b16 %v351
    %v580 = vunpack.c.l.b16 %v352
    %v581 = vunpack.c.l.b16 %v353
    %v582 = vunpack.c.l.b16 %v354
    %v583 = vunpack.c.l.b16 %v355
    %v584 = vunpack.c.l.b16 %v356
    %v585 = vunpack.c.l.b16 %v357
    %v586 = vunpack.c.l.b16 %v358
    %v587 = vunpack.c.l.b16 %v359
    %v588 = vunpack.c.l.b16 %v360
    %v589 = vunpack.c.l.b16 %v361
    %v590 = vunpack.c.l.b16 %v362
    %v591 = vunpack.c.l.b16 %v363
    %v592 = vunpack.c.l.b16 %v364
    %v593 = vunpack.c.l.b16 %v365
    %v594 = vunpack.c.l.b16 %v366
    %v595 = vunpack.c.l.b16 %v367
    %v596 = vunpack.c.l.b16 %v368
    %v597 = vunpack.c.l.b16 %v369
    %v598 = vunpack.c.l.b16 %v370
    %v599 = vunpack.c.l.b16 %v371
    %v600 = vunpack.c.l.b16 %v372
    %v601 = vunpack.c.l.b16 %v373
    %v602 = vunpack.c.l.b16 %v374
    %v603 = vunpack.c.l.b16 %v375
    %v604 = vunpack.c.l.b16 %v376
    %v605 = vunpack.c.l.b16 %v377
    %v606 = vunpack.c.l.b16 %v378
    %v607 = vunpack.c.l.b16 %v379
    %v608 = vpack.c.b16 %v497, %v496
    %v609 = vpack.c.b16 %v499, %v498
    %v610 = vpack.c.b16 %v501, %v500
    %v611 = vpack.c.b16 %v503, %v502
    %v612 = vpack.c.b16 %v505, %v504
    %v613 = vpack.c.b16 %v507, %v506
    %v614 = vpack.c.b16 %v509, %v508
    %v615 = vpack.c.b16 %v511, %v510
    %v616 = vpack.c.b16 %v513, %v512
    %v617 = vpack.c.b16 %v515, %v514
    %v618 = vpack.c.b16 %v517, %v516
    %v619 = vpack.c.b16 %v519, %v518
    %v620 = vpack.c.b16 %v521, %v520
    %v621 = vpack.c.b16 %v523, %v522
    %v622 = vpack.c.b16 %v525, %v524
    %v623 = vpack.c.b16 %v527, %v526
    %v624 = vpack.c.b16 %v529, %v528
    %v625 = vpack.c.b16 %v531, %v530
    %v626 = vpack.c.b16 %v533, %v532
    %v627 = vpack.c.b16 %v535, %v534
    %v628 = vpack.c.b16 %v537, %v536
    %v629 = vpack.c.b16 %v539, %v538
    %v630 = vpack.c.b16 %v541, %v540
    %v631 = vpack.c.b16 %v543, %v542
    %v632 = vpack.c.b16 %v545, %v544
    %v633 = vpack.c.b16 %v547, %v546
    %v634 = vpack.c.b16 %v549, %v548
    %v635 = vpack.c.b16 %v551, %v550
    %v636 = vpack.c.b16 %v553, %v552
    %v637 = vpack.c.b16 %v555, %v554
    %v638 = vpack.c.b16 %v557, %v556
    %v639 = vpack.c.b16 %v559, %v558
    %v640 = vpack.c.b16 %v561, %v560
    %v641 = vpack.c.b16 %v563, %v562
    %v642 = vpack.c.b16 %v565, %v564
    %v643 = vpack.c.b16 %v567, %v566
    %v644 = vpack.c.b16 %v569, %v568
    %v645 = vpack.c.b16 %v571, %v570
    %v646 = vpack.c.b16 %v573, %v572
    %v647 = vpack.c.b16 %v575, %v574
    %v648 = vpack.c.b16 %v577, %v576
    %v649 = vpack.c.b16 %v579, %v578
    %v650 = vpack.c.b16 %v581, %v580
    %v651 = vpack.c.b16 %v583, %v582
    %v652 = vpack.c.b16 %v585, %v584
    %v653 = vpack.c.b16 %v587, %v586
    %v654 = vpack.c.b16 %v589, %v588
    %v655 = vpack.c.b16 %v591, %v590
    %v656 = vpack.c.b16 %v593, %v592
    %v657 = vpack.c.b16 %v595, %v594
    %v658 = vpack.c.b16 %v597, %v596
    %v659 = vpack.c.b16 %v599, %v598
    %v660 = vpack.c.b16 %v601, %v600
    %v661 = vpack.c.b16 %v603, %v602
    %v662 = vpack.c.b16 %v605, %v604
    %v663 = vpack.c.b16 %v607, %v606
    %720 = vmatpush.bf16.msra.mxu0 %v615
    %721 = vmatpush.bf16.msra.mxu0 %v614
    %722 = vmatpush.bf16.msra.mxu0 %v613
    %723 = vmatpush.bf16.msra.mxu0 %v612
    %724 = vmatpush.bf16.msra.mxu0 %v611
    %725 = vmatpush.bf16.msra.mxu0 %v610
    %726 = vmatpush.bf16.msra.mxu0 %v609
    %727 = vmatpush.bf16.msra.mxu0 %v608
    %728 = vmatmul.bf16.gmra.mxu0 %v261
    %v729 = vpop.f32.mrf.mxu0
    %v730 = vadd.f32 %v382, %v729
    %v731 = vpop.f32.mrf.mxu0
    %732 = vdwg.mxu0
    %733 = vmatpush.bf16.msra.mxu0 %v623
    %734 = vmatpush.bf16.msra.mxu0 %v622
    %735 = vmatpush.bf16.msra.mxu0 %v621
    %736 = vmatpush.bf16.msra.mxu0 %v620
    %737 = vmatpush.bf16.msra.mxu0 %v619
    %738 = vmatpush.bf16.msra.mxu0 %v618
    %739 = vmatpush.bf16.msra.mxu0 %v617
    %740 = vmatpush.bf16.msra.mxu0 %v616
    %741 = vmatmul.bf16.gmra.mxu0 %v262
    %v742 = vpop.f32.mrf.mxu0
    %v743 = vadd.f32 %v730, %v742
    %v744 = vpop.f32.mrf.mxu0
    %745 = vdwg.mxu0
    %746 = vmatpush.bf16.msra.mxu0 %v631
    %747 = vmatpush.bf16.msra.mxu0 %v630
    %748 = vmatpush.bf16.msra.mxu0 %v629
    %749 = vmatpush.bf16.msra.mxu0 %v628
    %750 = vmatpush.bf16.msra.mxu0 %v627
    %751 = vmatpush.bf16.msra.mxu0 %v626
    %752 = vmatpush.bf16.msra.mxu0 %v625
    %753 = vmatpush.bf16.msra.mxu0 %v624
    %754 = vmatmul.bf16.gmra.mxu0 %v263
    %v755 = vpop.f32.mrf.mxu0
    %v756 = vadd.f32 %v743, %v755
    %v757 = vpop.f32.mrf.mxu0
    %758 = vdwg.mxu0
    %759 = vmatpush.bf16.msra.mxu0 %v639
    %760 = vmatpush.bf16.msra.mxu0 %v638
    %761 = vmatpush.bf16.msra.mxu0 %v637
    %762 = vmatpush.bf16.msra.mxu0 %v636
    %763 = vmatpush.bf16.msra.mxu0 %v635
    %764 = vmatpush.bf16.msra.mxu0 %v634
    %765 = vmatpush.bf16.msra.mxu0 %v633
    %766 = vmatpush.bf16.msra.mxu0 %v632
    %767 = vmatmul.bf16.gmra.mxu0 %v264
    %v768 = vpop.f32.mrf.mxu0
    %v769 = vadd.f32 %v756, %v768
    %v770 = vpop.f32.mrf.mxu0
    %771 = vdwg.mxu0
    %772 = vmatpush.bf16.msra.mxu0 %v647
    %773 = vmatpush.bf16.msra.mxu0 %v646
    %774 = vmatpush.bf16.msra.mxu0 %v645
    %775 = vmatpush.bf16.msra.mxu0 %v644
    %776 = vmatpush.bf16.msra.mxu0 %v643
    %777 = vmatpush.bf16.msra.mxu0 %v642
    %778 = vmatpush.bf16.msra.mxu0 %v641
    %779 = vmatpush.bf16.msra.mxu0 %v640
    %780 = vmatmul.bf16.gmra.mxu0 %v265
    %v781 = vpop.f32.mrf.mxu0
    %v782 = vadd.f32 %v769, %v781
    %v783 = vpop.f32.mrf.mxu0
    %784 = vdwg.mxu0
    %785 = vmatpush.bf16.msra.mxu0 %v655
    %786 = vmatpush.bf16.msra.mxu0 %v654
    %787 = vmatpush.bf16.msra.mxu0 %v653
    %788 = vmatpush.bf16.msra.mxu0 %v652
    %789 = vmatpush.bf16.msra.mxu0 %v651
    %790 = vmatpush.bf16.msra.mxu0 %v650
    %791 = vmatpush.bf16.msra.mxu0 %v649
    %792 = vmatpush.bf16.msra.mxu0 %v648
    %793 = vmatmul.bf16.gmra.mxu0 %v266
    %v794 = vpop.f32.mrf.mxu0
    %v795 = vadd.f32 %v782, %v794
    %v796 = vpop.f32.mrf.mxu0
    %797 = vdwg.mxu0
    %798 = vmatpush.bf16.msra.mxu0 %v663
    %799 = vmatpush.bf16.msra.mxu0 %v662
    %800 = vmatpush.bf16.msra.mxu0 %v661
    %801 = vmatpush.bf16.msra.mxu0 %v660
    %802 = vmatpush.bf16.msra.mxu0 %v659
    %803 = vmatpush.bf16.msra.mxu0 %v658
    %804 = vmatpush.bf16.msra.mxu0 %v657
    %805 = vmatpush.bf16.msra.mxu0 %v656
    %806 = vmatmul.bf16.gmra.mxu0 %v267
    %v807 = vpop.f32.mrf.mxu0
    %v808 = vadd.f32 %v795, %v807
    %v809 = vpop.f32.mrf.mxu0
    %810 = vdwg.mxu0
    %811 = vst [vmem:[#allocation7] sm:$0xff] %v808
    // Predicated region
    $region30: #{deterministic_decoder_forward.1} parent=1 // pred_check
      _
    $region31: #{deterministic_decoder_forward.1} parent=1 // pred_check_branch
      %813 = sbr.rel (0) target = $region33
    $region32: #{deterministic_decoder_forward.1} parent=1 // pred_region
      %815 = vsyncadd [#allocation4], 0
      %s817 = sshll.u32 [#allocation7], 4
      %s818 = int_to_ptr.vmem [resolvable:$true] %s817
      %s819 = sshll.u32 %s5, 4
      %s820 = int_to_ptr.hbm [resolvable:$true] %s819
      %822 = dma.vmem_to_hbm [thread:$0]  %s818, 128, %s820, [#allocation4]
    $region33: #{deterministic_decoder_forward.1} parent=1 // pred_fallthru
      _
    // Predicated region
    $region34: #{deterministic_decoder_forward.1} parent=1 // pred_check
      _
    $region35: #{deterministic_decoder_forward.1} parent=1 // pred_check_branch
      %824 = sbr.rel (0) target = $region37
    $region36: #{deterministic_decoder_forward.1} parent=1 // pred_region
      %826 = dma.done [#allocation4], 128
    $region37: #{deterministic_decoder_forward.1} parent=1 // pred_fallthru
      _
    %827 = vsyncpa [#allocation3], 1
    %828 = vsyncpa [#allocation6], 1
    %829 = vsyncpa [#allocation4], 1

</llo_original>
